<compile_context>
chip_gen: v7x
topology: tpu7x:2x2x1
jax: 0.10.0
libtpu: 0.0.40
codegen_flags: <defaults>
</compile_context>

<pallas_src>
import jax
import jax.numpy as jnp
from jax import lax
from jax.experimental import pallas as pl
from jax.experimental.pallas import tpu as pltpu

LANES = 128
ACC_ROWS = 8                    # one resident (8,128) f32 vreg of partials
MAX_BLOCK_ROWS = 4096           # (4096,128) f32 = 2 MiB / input / buffer
MIN_BLOCKS_FOR_SPLIT = 4        # only core-split when there is real work
N_SPLITS_MAX = 2                # v7x has 2 TensorCores; no-op on v5e/v6e
VMEM_LIMIT_BYTES = 32 * 1024 * 1024


def smpl_mask_criterion(real_segm, fake_segm, smpl_mask, weight,
                        max_block_rows=MAX_BLOCK_ROWS):
    """Returns dict(smplmask=loss) matching the PyTorch Criterion.forward."""
    assert real_segm.shape == fake_segm.shape == smpl_mask.shape
    n_elems = real_segm.size                      # static

    real_flat = real_segm.reshape(-1)
    fake_flat = fake_segm.reshape(-1)
    smpl_flat = smpl_mask.reshape(-1)

    rows = n_elems // LANES                       # lane-dense slab rows
    main_elems = rows * LANES

    # < 128-element tail handled in plain JAX (no pad pass over the inputs).
    if main_elems < n_elems:
        r_t = real_flat[main_elems:].astype(jnp.float32)
        f_t = fake_flat[main_elems:].astype(jnp.float32)
        m_t = smpl_flat[main_elems:].astype(jnp.float32)
        tail_sum = jnp.sum(jnp.clip(m_t * r_t - f_t, 0.0, 1.0))
    else:
        tail_sum = jnp.float32(0.0)

    if rows == 0:
        total = tail_sum
    else:
        # Free reshape when n_elems % 128 == 0 (the common case); otherwise
        # only the 128-divisible prefix is fed to the kernel.
        real2d = real_flat[:main_elems].reshape(rows, LANES)
        fake2d = fake_flat[:main_elems].reshape(rows, LANES)
        mask2d = smpl_flat[:main_elems].reshape(rows, LANES)

        # ---- block / split geometry (all static) ----
        if rows <= max_block_rows:
            # whole slab in one block: no tail masking, ragged rows OK
            block_rows, blocks_total, n_splits, bps = rows, 1, 1, 1
        else:
            block_rows = max(ACC_ROWS,
                             (max_block_rows // ACC_ROWS) * ACC_ROWS)
            blocks_total = pl.cdiv(rows, block_rows)
            if (blocks_total >= MIN_BLOCKS_FOR_SPLIT
                    and blocks_total % N_SPLITS_MAX == 0):
                n_splits = N_SPLITS_MAX
            else:
                n_splits = 1                      # avoid duplicate-block DMA
            bps = blocks_total // n_splits        # blocks per split (exact)

        needs_mask = (rows % block_rows) != 0     # only the last block is partial

        def data_map(s, j):
            return (s * bps + j, 0)

        def kernel(real_ref, fake_ref, smpl_ref, o_ref):
            s = pl.program_id(0)
            j = pl.program_id(1)

            @pl.when(j == 0)
            def _():
                o_ref[...] = jnp.zeros_like(o_ref)

            real = real_ref[...].astype(jnp.float32)
            fake = fake_ref[...].astype(jnp.float32)
            smpl = smpl_ref[...].astype(jnp.float32)
            missing = jnp.clip(smpl * real - fake, 0.0, 1.0)

            def accumulate(vals):
                if block_rows % ACC_ROWS == 0:
                    # pure VPU vreg adds into the resident (8,128) partials
                    o_ref[...] += vals.reshape(
                        block_rows // ACC_ROWS, ACC_ROWS, LANES).sum(axis=0)
                else:
                    # ragged single-block path (rows not a multiple of 8)
                    o_ref[0:1, :] += jnp.sum(vals, axis=0, keepdims=True)

            if not needs_mask:
                accumulate(missing)
            else:
                blk = s * bps + j
                is_tail = blk == blocks_total - 1

                @pl.when(jnp.logical_not(is_tail))
                def _():
                    accumulate(missing)

                @pl.when(is_tail)
                def _():
                    # (block_rows, 1) iota; predicate broadcasts across lanes
                    row_ids = blk * block_rows + lax.broadcasted_iota(
                        jnp.int32, (block_rows, 1), 0)
                    accumulate(jnp.where(row_ids < rows, missing, 0.0))

        in_spec = pl.BlockSpec((block_rows, LANES), data_map)
        out_spec = pl.BlockSpec((ACC_ROWS, LANES), lambda s, j: (s, 0))

        partials = pl.pallas_call(
            kernel,
            out_shape=jax.ShapeDtypeStruct((n_splits * ACC_ROWS, LANES),
                                           jnp.float32),
            grid_spec=pltpu.PrefetchScalarGridSpec(
                num_scalar_prefetch=0,
                grid=(n_splits, bps),
                in_specs=[in_spec, in_spec, in_spec],
                out_specs=out_spec,
            ),
            compiler_params=pltpu.CompilerParams(
                dimension_semantics=("parallel", "arbitrary"),
                vmem_limit_bytes=VMEM_LIMIT_BYTES,
            ),
        )(real2d, fake2d, mask2d)

        total = jnp.sum(partials) + tail_sum

    loss = (total / jnp.float32(n_elems)) * jnp.float32(weight)
    return dict(smplmask=loss)


def _reference(real_segm, fake_segm, smpl_mask, weight):
    r = real_segm.astype(jnp.float32)
    f = fake_segm.astype(jnp.float32)
    m = smpl_mask.astype(jnp.float32)
    missing = jnp.clip(m * r - f, 0.0, 1.0)
    return missing.mean() * jnp.float32(weight)


def _check(real, fake, smpl, weight, **kw):
    out = smpl_mask_criterion(real, fake, smpl, weight, **kw)
    loss = jax.block_until_ready(out["smplmask"])
    ref = _reference(real, fake, smpl, weight)
    assert jnp.allclose(loss, ref, atol=1e-5, rtol=1e-5), (loss, ref)


if __name__ == "__main__":
    key = jax.random.PRNGKey(0)
    k1, k2, k3, k4, k5, k6 = jax.random.split(key, 6)

    # 1) Primary: NCHW segmentation masks like the PyTorch module. Binary
    #    masks shipped as bf16 (exact 0/1) to exercise the low-bandwidth path.
    B, C, H, W = 2, 1, 16, 16
    real = (jax.random.uniform(k1, (B, C, H, W)) > 0.5).astype(jnp.bfloat16)
    fake = jax.random.uniform(k2, (B, C, H, W)).astype(jnp.float32)
    smpl = (jax.random.uniform(k3, (B, C, H, W)) > 0.5).astype(jnp.bfloat16)
    _check(real, fake, smpl, 2.5)

    # 2) numel not a multiple of 128 (<128-elem tail handled outside the
    #    kernel) + ragged single-block path (35 rows).
    shp = (1, 3, 37, 41)
    real2 = (jax.random.uniform(k4, shp) > 0.5).astype(jnp.float32)
    fake2 = jax.random.uniform(k5, shp).astype(jnp.float32)
    smpl2 = (jax.random.uniform(k6, shp) > 0.5).astype(jnp.float32)
    _check(real2, fake2, smpl2, 0.75)

    # 3) Multi-block path, odd block count -> n_splits=1, gated tail mask.
    #    9600 elems -> 75 rows -> 5 blocks of 16 rows (last block partial).
    shp = (2, 2, 48, 50)
    real3 = (jax.random.uniform(k1, shp) > 0.5).astype(jnp.float32)
    fake3 = jax.random.uniform(k2, shp).astype(jnp.float32)
    smpl3 = (jax.random.uniform(k3, shp) > 0.5).astype(jnp.float32)
    _check(real3, fake3, smpl3, 1.25, max_block_rows=16)

    # 4) Multi-block path with even block count -> 2-way "parallel" split
    #    (both TensorCores on v7x) + gated tail mask, no duplicate DMA.
    #    11520 elems -> 90 rows -> 6 blocks of 16 rows, 3 per split.
    shp = (2, 4, 36, 40)
    real4 = (jax.random.uniform(k4, shp) > 0.5).astype(jnp.bfloat16)
    fake4 = jax.random.uniform(k5, shp).astype(jnp.float32)
    smpl4 = (jax.random.uniform(k6, shp) > 0.5).astype(jnp.bfloat16)
    _check(real4, fake4, smpl4, 1.5, max_block_rows=16)

    print("KERNEL_OK")
</pallas_src>

<mosaic_0001>
module attributes {stable_mosaic.version = 11 : i64} {
  func.func @kernel(%arg0: i32, %arg1: i32, %arg2: memref<4x128xbf16, #tpu.memory_space<vmem>>, %arg3: memref<4x128xf32, #tpu.memory_space<vmem>>, %arg4: memref<4x128xbf16, #tpu.memory_space<vmem>>, %arg5: memref<8x128xf32, #tpu.memory_space<vmem>>) attributes {dimension_semantics = [#tpu.dimension_semantics<parallel>, #tpu.dimension_semantics<arbitrary>], iteration_bounds = array<i64: 1, 1>, scalar_prefetch = 0 : i64, scratch_operands = 0 : i64, tpu.core_type = #tpu.core_type<tc>, window_params = [{transform_indices = @transform_0, window_bounds = array<i64: 4, 128>}, {transform_indices = @transform_1, window_bounds = array<i64: 4, 128>}, {transform_indices = @transform_2, window_bounds = array<i64: 4, 128>}, {transform_indices = @transform_3, window_bounds = array<i64: 8, 128>}]} {
    %c0_i32 = arith.constant 0 : i32
    %0 = arith.cmpi eq, %arg1, %c0_i32 : i32
    %1 = arith.extui %0 : i1 to i32
    %c0_i32_0 = arith.constant 0 : i32
    %2 = arith.cmpi ne, %1, %c0_i32_0 : i32
    scf.if %2 {
      %cst_12 = arith.constant 0.000000e+00 : f32
      %19 = vector.broadcast %cst_12 : f32 to vector<8x128xf32>
      %c0_13 = arith.constant 0 : index
      %c0_14 = arith.constant 0 : index
      %20 = vector.load %arg5[%c0_13, %c0_14] : memref<8x128xf32, #tpu.memory_space<vmem>>, vector<8x128xf32>
      tpu.vector_store %arg5[%c0_13, %c0_14], %19 {strides = array<i32>} : memref<8x128xf32, #tpu.memory_space<vmem>>, vector<8x128xf32>,
    } else {
    }
    %c0 = arith.constant 0 : index
    %c0_1 = arith.constant 0 : index
    %3 = vector.load %arg2[%c0, %c0_1] : memref<4x128xbf16, #tpu.memory_space<vmem>>, vector<4x128xbf16>
    %4 = arith.extf %3 : vector<4x128xbf16> to vector<4x128xf32>
    %c0_2 = arith.constant 0 : index
    %c0_3 = arith.constant 0 : index
    %5 = vector.load %arg3[%c0_2, %c0_3] : memref<4x128xf32, #tpu.memory_space<vmem>>, vector<4x128xf32>
    %c0_4 = arith.constant 0 : index
    %c0_5 = arith.constant 0 : index
    %6 = vector.load %arg4[%c0_4, %c0_5] : memref<4x128xbf16, #tpu.memory_space<vmem>>, vector<4x128xbf16>
    %7 = arith.extf %6 : vector<4x128xbf16> to vector<4x128xf32>
    %8 = arith.mulf %7, %4 : vector<4x128xf32>
    %9 = arith.subf %8, %5 : vector<4x128xf32>
    %cst = arith.constant 0.000000e+00 : f32
    %cst_6 = arith.constant 1.000000e+00 : f32
    %10 = vector.broadcast %cst : f32 to vector<4x128xf32>
    %11 = arith.maximumf %10, %9 : vector<4x128xf32>
    %12 = vector.broadcast %cst_6 : f32 to vector<4x128xf32>
    %13 = arith.minimumf %12, %11 : vector<4x128xf32>
    %c0_7 = arith.constant 0 : index
    %c0_8 = arith.constant 0 : index
    %14 = vector.load %arg5[%c0_7, %c0_8] : memref<8x128xf32, #tpu.memory_space<vmem>>, vector<1x128xf32>
    %cst_9 = arith.constant dense<0.000000e+00> : vector<128xf32>
    %15 = vector.multi_reduction <add>, %13, %cst_9 [0] : vector<4x128xf32> to vector<128xf32>
    %16 = vector.shape_cast %15 : vector<128xf32> to vector<1x128xf32>
    %17 = arith.addf %14, %16 : vector<1x128xf32>
    %c0_10 = arith.constant 0 : index
    %c0_11 = arith.constant 0 : index
    %18 = vector.load %arg5[%c0_10, %c0_11] : memref<8x128xf32, #tpu.memory_space<vmem>>, vector<1x128xf32>
    tpu.vector_store %arg5[%c0_10, %c0_11], %17 {strides = array<i32>} : memref<8x128xf32, #tpu.memory_space<vmem>>, vector<1x128xf32>,
    return
  }
  func.func @transform_0(%arg0: i32, %arg1: i32) -> (i32, i32) {
    %c1_i32 = arith.constant 1 : i32
    %0 = arith.muli %arg0, %c1_i32 : i32
    %1 = arith.addi %0, %arg1 : i32
    %c0_i32 = arith.constant 0 : i32
    %c0_i32_0 = arith.constant 0 : i32
    return %1, %c0_i32 : i32, i32
  }
  func.func @transform_1(%arg0: i32, %arg1: i32) -> (i32, i32) {
    %c1_i32 = arith.constant 1 : i32
    %0 = arith.muli %arg0, %c1_i32 : i32
    %1 = arith.addi %0, %arg1 : i32
    %c0_i32 = arith.constant 0 : i32
    %c0_i32_0 = arith.constant 0 : i32
    return %1, %c0_i32 : i32, i32
  }
  func.func @transform_2(%arg0: i32, %arg1: i32) -> (i32, i32) {
    %c1_i32 = arith.constant 1 : i32
    %0 = arith.muli %arg0, %c1_i32 : i32
    %1 = arith.addi %0, %arg1 : i32
    %c0_i32 = arith.constant 0 : i32
    %c0_i32_0 = arith.constant 0 : i32
    return %1, %c0_i32 : i32, i32
  }
  func.func @transform_3(%arg0: i32, %arg1: i32) -> (i32, i32) {
    %c0_i32 = arith.constant 0 : i32
    %c0_i32_0 = arith.constant 0 : i32
    return %arg0, %c0_i32 : i32, i32
  }
}

</mosaic_0001>

<llo_original>
// kernel: tpu_custom_call.1
$region0: #{tpu_custom_call.1}
  #allocation0 [shape = 'u32[]', space=smem, size = 0x4, offset = 0x4, fixed_abs, tag = 'smem constant byte address 0x4 - core index']
  #allocation1 [shape = 'u32[144,128]{1,0:T(1,128)}', space=vmem, size = 0x12000, scoped, tag = 'internal scratch']
  %s0 = inlined_call_operand.hbm [shape: bf16[4,128], index: 0, kind: input, shape index: {}]
  %s1 = inlined_call_operand.hbm [shape: f32[4,128], index: 1, kind: input, shape index: {}]
  %s2 = inlined_call_operand.vmem [shape: bf16[4,128], index: 2, kind: input, shape index: {}]
  %s3 = inlined_call_operand.hbm [shape: f32[8,128], index: 3, kind: output, shape index: {}]
  %s4 = sld [smem:[#allocation0]]
  $region34: #{tpu_custom_call.1} parent=0
    _
  %s6 = ssub.s32 1, %s4
  %s7 = scalar_select 0, %s6, %s4
  $region1: #{tpu_custom_call.1} parent=0
    #allocation2 [shape = 'u8[1024]{0}', space=vmem, size = 0x400, scoped, tag = 'input window, operand 0, single buffered']
    #allocation3 [shape = 's32[1]{0}', space=sflag, size = 0x4, scoped, tag = 'scoped memory for tpu_custom_call.1']
    #allocation4 [shape = 's32[1]{0}', space=sflag, size = 0x4, scoped, tag = 'scoped memory for tpu_custom_call.1']
    #allocation5 [shape = 'u8[2048]{0}', space=vmem, size = 0x800, scoped, tag = 'input window, operand 1, single buffered']
    #allocation6 [shape = 's32[1]{0}', space=sflag, size = 0x4, scoped, tag = 'scoped memory for tpu_custom_call.1']
    #allocation7 [shape = 'u8[4096]{0}', space=vmem, size = 0x1000, scoped, tag = 'output window, operand 0, single buffered']
    %8 = vsyncpa [#allocation3], 0
    %9 = vsyncpa [#allocation6], 0
    %10 = vsyncpa [#allocation4], 0
    // Predicated region
    $region2: #{tpu_custom_call.1} parent=1 // pred_check
      _
    $region3: #{tpu_custom_call.1} parent=1 // pred_check_branch
      %12 = sbr.rel (0) target = $region5
    $region4: #{tpu_custom_call.1} parent=1 // pred_region
      %s13 = sadd.s32 0, 0
      %s15 = ssub.s32 32, 32
      %16 = vsyncadd [#allocation3], %s15
      %s17 = smul.addr %s13, 32
      %s18 = scalar_lea.hbm %s0, %s17
      %s20 = sshll.u32 [#allocation2], 4
      %s21 = int_to_ptr.vmem [resolvable:$true] %s20
      %23 = dma.hbm_to_vmem [thread:$0]  %s18, 32, %s21, [#allocation3]
    $region5: #{tpu_custom_call.1} parent=1 // pred_fallthru
      _
    // Predicated region
    $region6: #{tpu_custom_call.1} parent=1 // pred_check
      _
    $region7: #{tpu_custom_call.1} parent=1 // pred_check_branch
      %25 = sbr.rel (0) target = $region9
    $region8: #{tpu_custom_call.1} parent=1 // pred_region
      %s26 = sadd.s32 0, 0
      %s28 = ssub.s32 64, 64
      %29 = vsyncadd [#allocation6], %s28
      %s30 = smul.addr %s26, 64
      %s31 = scalar_lea.hbm %s1, %s30
      %s33 = sshll.u32 [#allocation5], 4
      %s34 = int_to_ptr.vmem [resolvable:$true] %s33
      %36 = dma.hbm_to_vmem [thread:$0]  %s31, 64, %s34, [#allocation6]
    $region9: #{tpu_custom_call.1} parent=1 // pred_fallthru
      _
    // Predicated region
    $region10: #{tpu_custom_call.1} parent=1 // pred_check
      _
    $region11: #{tpu_custom_call.1} parent=1 // pred_check_branch
      %38 = sbr.rel (0) target = $region13
    $region12: #{tpu_custom_call.1} parent=1 // pred_region
      %s39 = sadd.s32 0, 0
      %p40 = scmp.lt.s32.totalorder %s39, 0
      %s41 = scalar_select %p40, %s39, 0
      %s42 = smul.addr %s41, 2
      %s43 = scalar_lea.vmem %s2, %s42
      %s44 = sadd.s32 0, 0
    $region13: #{tpu_custom_call.1} parent=1 // pred_fallthru
      _
    // Predicated region
    $region14: #{tpu_custom_call.1} parent=1 // pred_check
      _
    $region15: #{tpu_custom_call.1} parent=1 // pred_check_branch
      %46 = sbr.rel (0) target = $region17
    $region16: #{tpu_custom_call.1} parent=1 // pred_region
      %47 = dma.done [#allocation3], 32
    $region17: #{tpu_custom_call.1} parent=1 // pred_fallthru
      _
    // Predicated region
    $region18: #{tpu_custom_call.1} parent=1 // pred_check
      _
    $region19: #{tpu_custom_call.1} parent=1 // pred_check_branch
      %49 = sbr.rel (0) target = $region21
    $region20: #{tpu_custom_call.1} parent=1 // pred_region
      %50 = dma.done [#allocation6], 64
    $region21: #{tpu_custom_call.1} parent=1 // pred_fallthru
      _
    %s51 = sadd.s32 0, 0
    %p52 = scmp.lt.s32.totalorder %s51, 0
    %s53 = scalar_select %p52, %s51, 0
    %s54 = smul.addr %s53, 2
    %s55 = scalar_lea.vmem %s2, %s54
    %s56 = sadd.s32 0, 0
    %s57 = sadd.s32 0, 0
    %s58 = sadd.s32 0, 0
    %p59 = scmp.lt.s32.totalorder %s58, 0
    %s60 = scalar_select %p59, %s58, 0
    %s61 = smul.addr %s60, 2
    %s62 = scalar_lea.vmem %s2, %s61
    %s63 = sadd.s32 0, 0
    %p64 = scmp.eq.s32.totalorder 0, 0
    // Predicated region
    $region22: #{tpu_custom_call.1} parent=1 // pred_check
      %p65 = pneg %p64
    $region23: #{tpu_custom_call.1} parent=1 // pred_check_branch
      %67 = sbr.rel (%p65) target = $region25
    $region24: #{tpu_custom_call.1} parent=1 // pred_region
      %68 = vst [vmem:[#allocation7] sm:$0xff] 0.0
    $region25: #{tpu_custom_call.1} parent=1 // pred_fallthru
      _
    %v69 = vld [vmem:[#allocation2] sm:$0x3]
    %v70 = vunpack.c.l.bf16 %v69
    %v71 = vld [vmem:[#allocation5] sm:$0xf]
    %v72 = vld [vmem:[%s62] sm:$0x3]
    %v73 = vunpack.c.l.bf16 %v72
    %v74 = vmul.f32 %v73, %v70
    %v75 = vsub.f32 %v74, %v71
    %v76 = vmax.f32 %v75, 0.0
    %v77 = vmin.f32 %v76, 1.0
    %v78 = vld [vmem:[#allocation7] sm:$0x1]
    %vm79 = vcmask 1043456
    %v80 = vsel %vm79, %v77, 0.0
    %v81 = vrot.slane %v80, 4
    %v82 = vadd.f32 %v80, %v81
    %v83 = vrot.slane %v82, 2
    %v84 = vadd.f32 %v82, %v83
    %v85 = vrot.slane %v84, 1
    %v86 = vadd.f32 %v84, %v85
    %v87 = vadd.f32 %v78, %v86
    %88 = vst [vmem:[#allocation7] sm:$0x1] %v87
    // Predicated region
    $region26: #{tpu_custom_call.1} parent=1 // pred_check
      _
    $region27: #{tpu_custom_call.1} parent=1 // pred_check_branch
      %90 = sbr.rel (0) target = $region29
    $region28: #{tpu_custom_call.1} parent=1 // pred_region
      %s92 = ssub.s32 128, 128
      %93 = vsyncadd [#allocation4], %s92
      %s95 = sshll.u32 [#allocation7], 4
      %s96 = int_to_ptr.vmem [resolvable:$true] %s95
      %98 = dma.vmem_to_hbm [thread:$0]  %s96, 128, %s3, [#allocation4]
    $region29: #{tpu_custom_call.1} parent=1 // pred_fallthru
      _
    // Predicated region
    $region30: #{tpu_custom_call.1} parent=1 // pred_check
      _
    $region31: #{tpu_custom_call.1} parent=1 // pred_check_branch
      %100 = sbr.rel (0) target = $region33
    $region32: #{tpu_custom_call.1} parent=1 // pred_region
      %101 = dma.done [#allocation4], 128
    $region33: #{tpu_custom_call.1} parent=1 // pred_fallthru
      _
    %102 = vsyncpa [#allocation3], 1
    %103 = vsyncpa [#allocation6], 1
    %104 = vsyncpa [#allocation4], 1

</llo_original>
